<compile_context>
chip_gen: v6e
topology: v6e:2x2x1
jax: 0.10.0
libtpu: 0.0.40
codegen_flags: <defaults>
</compile_context>

<pallas_src>
import functools

import jax
import jax.numpy as jnp
from jax import lax
from jax.experimental import pallas as pl
from jax.experimental.pallas import tpu as pltpu

_LANES = 128
_MAX_BLOCK_ROWS = 2048      # 2048 x 128 x 4B = 1 MiB per f32 operand buffer
_MIN_BLOCK_ROWS = 512       # don't shrink below 256 KiB just to add grid steps
_VMEM_LIMIT_BYTES = 32 * 1024 * 1024


def _round_up(v, m):
    return ((v + m - 1) // m) * m


def _focal_elementwise(x, t, gamma, alpha):
    """Elementwise focal(BCE-with-logits) loss, computed in f32."""
    x = x.astype(jnp.float32)
    t = t.astype(jnp.float32)

    # Stable BCE-with-logits: max(x,0) - x*t + log(1 + exp(-|x|)).
    e = jnp.exp(-jnp.abs(x))            # single exp, reused by sigmoid below
    one_plus_e = 1.0 + e                # shared by log(...) and the reciprocal
    bce = jnp.maximum(x, 0.0) - x * t + jnp.log(one_plus_e)

    # Exact sigmoid from the same exp (approx reciprocal is not accurate enough
    # once amplified through the modulating factor).
    inv = 1.0 / one_plus_e
    p = jnp.where(x >= 0.0, inv, 1.0 - inv)

    # z = 1 - p_t with p_t = t*p + (1-t)*(1-p)      ==>  z = p + t*(1 - 2p)
    z = p + t * (1.0 - 2.0 * p)
    # alpha_factor = t*alpha + (1-t)*(1-alpha)      ==>  (1-alpha) + t*(2a-1)
    alpha_factor = (1.0 - alpha) + t * (2.0 * alpha - 1.0)

    if gamma == 1.5:
        modulating = z * jnp.sqrt(z)    # z**1.5 without exp/log
    elif gamma == 2.0:
        modulating = z * z
    elif gamma == 1.0:
        modulating = z
    elif gamma == 0.0:
        modulating = jnp.ones_like(z)
    else:
        # Clamp away from 0 so pow's exp(g*log(z)) path never sees log(0).
        modulating = jnp.power(jnp.maximum(z, 1e-30), gamma)

    return bce * (alpha_factor * modulating)


def _focal_reduce_kernel(pred_ref, true_ref, partial_ref, *, gamma, alpha,
                         rows, block_rows):
    """'mean'/'sum' path: emit only an (8,128) partial sum per grid step."""
    loss = _focal_elementwise(pred_ref[...], true_ref[...], gamma, alpha)
    if rows % block_rows != 0:
        # Last grid step's block extends past the array: zero the garbage rows.
        valid_rows = rows - pl.program_id(0) * block_rows
        row_idx = lax.broadcasted_iota(jnp.int32, (block_rows, _LANES), 0)
        loss = jnp.where(row_idx < valid_rows, loss, 0.0)
    # Fold rows into groups of 8 sublanes and add (pure VPU adds, no XLU reduce).
    partial = jnp.sum(loss.reshape(block_rows // 8, 8, _LANES), axis=0)
    partial_ref[...] = partial[None]    # block shape (1, 8, 128)


def _focal_none_kernel(pred_ref, true_ref, loss_ref, *, gamma, alpha):
    """'none' path: write the elementwise loss tile (OOB rows are dropped)."""
    loss = _focal_elementwise(pred_ref[...], true_ref[...], gamma, alpha)
    loss_ref[...] = loss.astype(loss_ref.dtype)


def _choose_block_rows(rows):
    if rows <= _MIN_BLOCK_ROWS:
        return max(8, _round_up(rows, 8))
    # Large inputs: keep roughly >= 8 grid steps (v7x megacore + pipelining) while
    # keeping each block MiB-scale for the HBM roofline, capped at _MAX_BLOCK_ROWS.
    per8 = _round_up(pl.cdiv(rows, 8), 8)
    return int(min(_MAX_BLOCK_ROWS, max(_MIN_BLOCK_ROWS, per8)))


def focal_loss(pred, true, *, gamma=1.5, alpha=0.25, reduction="mean"):
    """Pallas FocalLoss(BCEWithLogitsLoss(reduction=reduction)) forward."""
    # TODO(synk): plain BCEWithLogitsLoss assumed (no weight / pos_weight).
    assert pred.shape == true.shape
    orig_shape = pred.shape
    n = pred.size

    pred_flat = jnp.ravel(pred)
    true_flat = jnp.ravel(true)

    rows = pl.cdiv(n, _LANES)
    lane_pad = rows * _LANES - n
    if lane_pad:
        # TODO(synk): a tail that is not a multiple of 128 lanes still needs one
        # padded copy to form the lane-dense slab; pred=-100 / true=0 padding
        # yields exactly zero focal loss, so it is inert on the reduce path and
        # sliced off on the 'none' path.
        pred_flat = jnp.pad(pred_flat, (0, lane_pad), constant_values=-100.0)
        true_flat = jnp.pad(true_flat, (0, lane_pad), constant_values=0.0)
    pred2 = pred_flat.reshape(rows, _LANES)
    true2 = true_flat.reshape(rows, _LANES)

    block_rows = _choose_block_rows(rows)
    num_blocks = pl.cdiv(rows, block_rows)

    in_specs = [
        pl.BlockSpec((block_rows, _LANES), lambda i: (i, 0)),
        pl.BlockSpec((block_rows, _LANES), lambda i: (i, 0)),
    ]
    cparams = pltpu.CompilerParams(
        dimension_semantics=("parallel",),
        vmem_limit_bytes=_VMEM_LIMIT_BYTES,
    )
    kparams = dict(gamma=float(gamma), alpha=float(alpha))
    in_bytes = (pred2.size * pred2.dtype.itemsize
                + true2.size * true2.dtype.itemsize)

    if reduction in ("mean", "sum"):
        out_bytes = num_blocks * 8 * _LANES * 4
        partials = pl.pallas_call(
            functools.partial(_focal_reduce_kernel, rows=rows,
                              block_rows=block_rows, **kparams),
            out_shape=jax.ShapeDtypeStruct((num_blocks, 8, _LANES), jnp.float32),
            grid_spec=pl.GridSpec(
                grid=(num_blocks,),
                in_specs=in_specs,
                out_specs=pl.BlockSpec((1, 8, _LANES), lambda i: (i, 0, 0)),
            ),
            compiler_params=cparams,
            cost_estimate=pl.CostEstimate(flops=20 * n, transcendentals=4 * n,
                                          bytes_accessed=in_bytes + out_bytes),
        )(pred2, true2)
        total = jnp.sum(partials)
        if reduction == "mean":
            return total / jnp.float32(n)
        return total

    # reduction == 'none' -- output in the input dtype (bf16 in -> bf16 out).
    out_dtype = pred.dtype if jnp.issubdtype(pred.dtype, jnp.floating) else jnp.float32
    out_bytes = rows * _LANES * jnp.dtype(out_dtype).itemsize
    loss2 = pl.pallas_call(
        functools.partial(_focal_none_kernel, **kparams),
        out_shape=jax.ShapeDtypeStruct((rows, _LANES), out_dtype),
        grid_spec=pl.GridSpec(
            grid=(num_blocks,),
            in_specs=in_specs,
            out_specs=pl.BlockSpec((block_rows, _LANES), lambda i: (i, 0)),
        ),
        compiler_params=cparams,
        cost_estimate=pl.CostEstimate(flops=20 * n, transcendentals=4 * n,
                                      bytes_accessed=in_bytes + out_bytes),
    )(pred2, true2)
    return loss2.reshape(-1)[:n].reshape(orig_shape)


def _focal_loss_ref(pred, true, gamma=1.5, alpha=0.25, reduction="mean"):
    """Pure-JAX reference mirroring the PyTorch module semantics."""
    x = pred.astype(jnp.float32)
    t = true.astype(jnp.float32)
    bce = jnp.maximum(x, 0.0) - x * t + jnp.log1p(jnp.exp(-jnp.abs(x)))
    p = jax.nn.sigmoid(x)
    p_t = t * p + (1 - t) * (1 - p)
    alpha_factor = t * alpha + (1 - t) * (1 - alpha)
    modulating = (1.0 - p_t) ** gamma
    loss = bce * alpha_factor * modulating
    if reduction == "mean":
        return loss.mean()
    elif reduction == "sum":
        return loss.sum()
    return loss


if __name__ == "__main__":
    ATOL, RTOL = 1e-5, 1e-3

    key = jax.random.PRNGKey(0)
    k_pred, k_true = jax.random.split(key)

    # Module-consistent small NCHW shape (n divisible by 128 -> no pad at all).
    shape = (2, 4, 16, 16)
    pred = jax.random.normal(k_pred, shape, dtype=jnp.float32)
    true = jax.random.bernoulli(k_true, p=0.3, shape=shape).astype(jnp.float32)

    out = jax.block_until_ready(focal_loss(pred, true, gamma=1.5, alpha=0.25, reduction="mean"))
    ref = _focal_loss_ref(pred, true, gamma=1.5, alpha=0.25, reduction="mean")
    assert jnp.allclose(out, ref, atol=ATOL, rtol=RTOL), (out, ref)

    out_sum = jax.block_until_ready(focal_loss(pred, true, reduction="sum"))
    ref_sum = _focal_loss_ref(pred, true, reduction="sum")
    assert jnp.allclose(out_sum, ref_sum, atol=ATOL, rtol=RTOL), (out_sum, ref_sum)

    out_none = jax.block_until_ready(focal_loss(pred, true, reduction="none"))
    ref_none = _focal_loss_ref(pred, true, reduction="none")
    assert jnp.allclose(out_none, ref_none, atol=ATOL, rtol=RTOL)

    # Ragged shape -> exercises the 128-lane tail padding path.
    shape_r = (3, 5, 7, 9)
    pred_r = jax.random.normal(jax.random.PRNGKey(1), shape_r, dtype=jnp.float32)
    true_r = jax.random.bernoulli(jax.random.PRNGKey(2), p=0.4, shape=shape_r).astype(jnp.float32)
    out_r = jax.block_until_ready(focal_loss(pred_r, true_r, reduction="mean"))
    ref_r = _focal_loss_ref(pred_r, true_r, reduction="mean")
    assert jnp.allclose(out_r, ref_r, atol=ATOL, rtol=RTOL), (out_r, ref_r)
    out_rn = jax.block_until_ready(focal_loss(pred_r, true_r, reduction="none"))
    ref_rn = _focal_loss_ref(pred_r, true_r, reduction="none")
    assert jnp.allclose(out_rn, ref_rn, atol=ATOL, rtol=RTOL)

    # Multi-block shape whose rows (640) are NOT a multiple of block_rows (512):
    # exercises the in-kernel row mask (reduce path) and dropped OOB stores (none).
    shape_m = (2, 4, 80, 128)
    pred_m = jax.random.normal(jax.random.PRNGKey(5), shape_m, dtype=jnp.float32)
    true_m = jax.random.bernoulli(jax.random.PRNGKey(6), p=0.3, shape=shape_m).astype(jnp.float32)
    out_m = jax.block_until_ready(focal_loss(pred_m, true_m, reduction="mean"))
    ref_m = _focal_loss_ref(pred_m, true_m, reduction="mean")
    assert jnp.allclose(out_m, ref_m, atol=ATOL, rtol=RTOL), (out_m, ref_m)
    out_mn = jax.block_until_ready(focal_loss(pred_m, true_m, reduction="none"))
    ref_mn = _focal_loss_ref(pred_m, true_m, reduction="none")
    assert jnp.allclose(out_mn, ref_mn, atol=ATOL, rtol=RTOL)

    # bf16 inputs consumed directly by the kernel (cast to f32 inside).
    shape_b = (2, 4, 64, 64)
    pred_b = jax.random.normal(jax.random.PRNGKey(3), shape_b, dtype=jnp.bfloat16)
    true_b = jax.random.bernoulli(jax.random.PRNGKey(4), p=0.3, shape=shape_b).astype(jnp.bfloat16)
    out_b = jax.block_until_ready(focal_loss(pred_b, true_b, reduction="mean"))
    ref_b = _focal_loss_ref(pred_b, true_b, reduction="mean")
    assert jnp.allclose(out_b, ref_b, atol=ATOL, rtol=RTOL), (out_b, ref_b)

    print("KERNEL_OK")
</pallas_src>

<mosaic_0001>
module attributes {stable_mosaic.version = 11 : i64} {
  func.func @_focal_reduce_kernel(%arg0: i32, %arg1: memref<16x128xf32, #tpu.memory_space<vmem>>, %arg2: memref<16x128xf32, #tpu.memory_space<vmem>>, %arg3: memref<1x8x128xf32, #tpu.memory_space<vmem>>) attributes {dimension_semantics = [#tpu.dimension_semantics<parallel>], iteration_bounds = array<i64: 1>, scalar_prefetch = 0 : i64, scratch_operands = 0 : i64, tpu.core_type = #tpu.core_type<tc>, window_params = [{transform_indices = @transform_0, window_bounds = array<i64: 16, 128>}, {transform_indices = @transform_1, window_bounds = array<i64: 16, 128>}, {transform_indices = @transform_2, window_bounds = array<i64: 1, 8, 128>}]} {
    %c0 = arith.constant 0 : index
    %c0_0 = arith.constant 0 : index
    %0 = vector.load %arg1[%c0, %c0_0] : memref<16x128xf32, #tpu.memory_space<vmem>>, vector<16x128xf32>
    %c0_1 = arith.constant 0 : index
    %c0_2 = arith.constant 0 : index
    %1 = vector.load %arg2[%c0_1, %c0_2] : memref<16x128xf32, #tpu.memory_space<vmem>>, vector<16x128xf32>
    %2 = math.absf %0 : vector<16x128xf32>
    %cst = arith.constant 0.000000e+00 : f32
    %3 = vector.broadcast %cst : f32 to vector<16x128xf32>
    %4 = arith.subf %3, %2 : vector<16x128xf32>
    %5 = math.exp %4 : vector<16x128xf32>
    %cst_3 = arith.constant 1.000000e+00 : f32
    %6 = vector.broadcast %cst_3 : f32 to vector<16x128xf32>
    %7 = arith.addf %6, %5 : vector<16x128xf32>
    %cst_4 = arith.constant 0.000000e+00 : f32
    %8 = vector.broadcast %cst_4 : f32 to vector<16x128xf32>
    %9 = arith.maximumf %0, %8 : vector<16x128xf32>
    %10 = arith.mulf %0, %1 : vector<16x128xf32>
    %11 = arith.subf %9, %10 : vector<16x128xf32>
    %12 = math.log %7 : vector<16x128xf32>
    %13 = arith.addf %11, %12 : vector<16x128xf32>
    %cst_5 = arith.constant 1.000000e+00 : f32
    %14 = vector.broadcast %cst_5 : f32 to vector<16x128xf32>
    %15 = arith.divf %14, %7 : vector<16x128xf32>
    %cst_6 = arith.constant 0.000000e+00 : f32
    %16 = vector.broadcast %cst_6 : f32 to vector<16x128xf32>
    %17 = arith.cmpf oge, %0, %16 : vector<16x128xf32>
    %cst_7 = arith.constant 1.000000e+00 : f32
    %18 = vector.broadcast %cst_7 : f32 to vector<16x128xf32>
    %19 = arith.subf %18, %15 : vector<16x128xf32>
    %20 = arith.select %17, %15, %19 : vector<16x128xi1>, vector<16x128xf32>
    %cst_8 = arith.constant 2.000000e+00 : f32
    %21 = vector.broadcast %cst_8 : f32 to vector<16x128xf32>
    %22 = arith.mulf %21, %20 : vector<16x128xf32>
    %cst_9 = arith.constant 1.000000e+00 : f32
    %23 = vector.broadcast %cst_9 : f32 to vector<16x128xf32>
    %24 = arith.subf %23, %22 : vector<16x128xf32>
    %25 = arith.mulf %1, %24 : vector<16x128xf32>
    %26 = arith.addf %20, %25 : vector<16x128xf32>
    %cst_10 = arith.constant -5.000000e-01 : f32
    %27 = vector.broadcast %cst_10 : f32 to vector<16x128xf32>
    %28 = arith.mulf %1, %27 : vector<16x128xf32>
    %cst_11 = arith.constant 7.500000e-01 : f32
    %29 = vector.broadcast %cst_11 : f32 to vector<16x128xf32>
    %30 = arith.addf %29, %28 : vector<16x128xf32>
    %31 = math.sqrt %26 : vector<16x128xf32>
    %32 = arith.mulf %26, %31 : vector<16x128xf32>
    %33 = arith.mulf %30, %32 : vector<16x128xf32>
    %34 = arith.mulf %13, %33 : vector<16x128xf32>
    %35 = vector.shape_cast %34 : vector<16x128xf32> to vector<2x8x128xf32>
    %cst_12 = arith.constant dense<0.000000e+00> : vector<8x128xf32>
    %36 = vector.multi_reduction <add>, %35, %cst_12 [0] : vector<2x8x128xf32> to vector<8x128xf32>
    %37 = vector.shape_cast %36 : vector<8x128xf32> to vector<1x8x128xf32>
    %c0_13 = arith.constant 0 : index
    %c0_14 = arith.constant 0 : index
    %c0_15 = arith.constant 0 : index
    %38 = vector.load %arg3[%c0_13, %c0_14, %c0_15] : memref<1x8x128xf32, #tpu.memory_space<vmem>>, vector<1x8x128xf32>
    tpu.vector_store %arg3[%c0_13, %c0_14, %c0_15], %37 {strides = array<i32>} : memref<1x8x128xf32, #tpu.memory_space<vmem>>, vector<1x8x128xf32>,
    return
  }
  func.func @transform_0(%arg0: i32) -> (i32, i32) {
    %c0_i32 = arith.constant 0 : i32
    %c0_i32_0 = arith.constant 0 : i32
    return %arg0, %c0_i32 : i32, i32
  }
  func.func @transform_1(%arg0: i32) -> (i32, i32) {
    %c0_i32 = arith.constant 0 : i32
    %c0_i32_0 = arith.constant 0 : i32
    return %arg0, %c0_i32 : i32, i32
  }
  func.func @transform_2(%arg0: i32) -> (i32, i32, i32) {
    %c0_i32 = arith.constant 0 : i32
    %c0_i32_0 = arith.constant 0 : i32
    %c0_i32_1 = arith.constant 0 : i32
    return %arg0, %c0_i32, %c0_i32_0 : i32, i32, i32
  }
}

</mosaic_0001>

<llo_original>
// kernel: tpu_custom_call.1
$region0: #{tpu_custom_call.1}
  #allocation0 [shape = 'u32[]', space=smem, size = 0x4, offset = 0x4, fixed_abs, tag = 'smem constant byte address 0x4 - core index']
  #allocation1 [shape = 'u32[144,128]{1,0:T(1,128)}', space=vmem, size = 0x12000, scoped, tag = 'internal scratch']
  %s0 = inlined_call_operand.hbm [shape: f32[16,128], index: 0, kind: input, shape index: {}]
  %s1 = inlined_call_operand.hbm [shape: f32[16,128], index: 1, kind: input, shape index: {}]
  %s2 = inlined_call_operand.hbm [shape: f32[1,8,128], index: 2, kind: output, shape index: {}]
  %s3 = sld [smem:[#allocation0]]
  $region26: #{tpu_custom_call.1} parent=0
    _
  %s5 = ssub.s32 1, %s3
  %s6 = scalar_select 0, %s5, %s3
  $region1: #{tpu_custom_call.1} parent=0
    #allocation2 [shape = 'u8[8192]{0}', space=vmem, size = 0x2000, scoped, tag = 'input window, operand 0, single buffered']
    #allocation3 [shape = 's32[1]{0}', space=sflag, size = 0x4, scoped, tag = 'scoped memory for tpu_custom_call.1']
    #allocation4 [shape = 's32[1]{0}', space=sflag, size = 0x4, scoped, tag = 'scoped memory for tpu_custom_call.1']
    #allocation5 [shape = 'u8[8192]{0}', space=vmem, size = 0x2000, scoped, tag = 'input window, operand 1, single buffered']
    #allocation6 [shape = 's32[1]{0}', space=sflag, size = 0x4, scoped, tag = 'scoped memory for tpu_custom_call.1']
    #allocation7 [shape = 'u8[4096]{0}', space=vmem, size = 0x1000, scoped, tag = 'output window, operand 0, single buffered']
    %7 = vsyncpa [#allocation3], 0
    %8 = vsyncpa [#allocation6], 0
    %9 = vsyncpa [#allocation4], 0
    // Predicated region
    $region2: #{tpu_custom_call.1} parent=1 // pred_check
      _
    $region3: #{tpu_custom_call.1} parent=1 // pred_check_branch
      %11 = sbr.rel (0) target = $region5
    $region4: #{tpu_custom_call.1} parent=1 // pred_region
      %s13 = ssub.s32 256, 256
      %14 = vsyncadd [#allocation3], %s13
      %s15 = sshll.u32 [#allocation2], 4
      %s16 = int_to_ptr.vmem [resolvable:$true] %s15
      %21 = dma.hbm_to_vmem [thread:$0]  %s0, 256, %s16, [#allocation3], 128, 128, 8
    $region5: #{tpu_custom_call.1} parent=1 // pred_fallthru
      _
    // Predicated region
    $region6: #{tpu_custom_call.1} parent=1 // pred_check
      _
    $region7: #{tpu_custom_call.1} parent=1 // pred_check_branch
      %23 = sbr.rel (0) target = $region9
    $region8: #{tpu_custom_call.1} parent=1 // pred_region
      %s25 = ssub.s32 256, 256
      %26 = vsyncadd [#allocation6], %s25
      %s27 = sshll.u32 [#allocation5], 4
      %s28 = int_to_ptr.vmem [resolvable:$true] %s27
      %33 = dma.hbm_to_vmem [thread:$0]  %s1, 256, %s28, [#allocation6], 128, 128, 8
    $region9: #{tpu_custom_call.1} parent=1 // pred_fallthru
      _
    // Predicated region
    $region10: #{tpu_custom_call.1} parent=1 // pred_check
      _
    $region11: #{tpu_custom_call.1} parent=1 // pred_check_branch
      %35 = sbr.rel (0) target = $region13
    $region12: #{tpu_custom_call.1} parent=1 // pred_region
      %36 = dma.done [#allocation3], 256
    $region13: #{tpu_custom_call.1} parent=1 // pred_fallthru
      _
    // Predicated region
    $region14: #{tpu_custom_call.1} parent=1 // pred_check
      _
    $region15: #{tpu_custom_call.1} parent=1 // pred_check_branch
      %38 = sbr.rel (0) target = $region17
    $region16: #{tpu_custom_call.1} parent=1 // pred_region
      %39 = dma.done [#allocation6], 256
    $region17: #{tpu_custom_call.1} parent=1 // pred_fallthru
      _
    %v40 = vld [vmem:[#allocation2] sm:$0xff]
    %v41 = vld [vmem:[#allocation2 + $0x8] sm:$0xff]
    %v42 = vld [vmem:[#allocation5] sm:$0xff]
    %v43 = vld [vmem:[#allocation5 + $0x8] sm:$0xff]
    %v44 = vand.u32 2147483647, %v40
    %v45 = vand.u32 2147483647, %v41
    %v46 = vsub.f32 0.0, %v44
    %v47 = vsub.f32 0.0, %v45
    %v48 = vmul.f32 %v46, 1.442695
    %v49 = vpow.pop %v48
    %v50 = vmul.f32 %v47, 1.442695
    %v51 = vpow.pop %v50
    %v52 = vadd.f32 %v49, 1.0
    %v53 = vadd.f32 %v51, 1.0
    %v54 = vmax.f32 %v40, 0.0
    %v55 = vmax.f32 %v41, 0.0
    %v56 = vmul.f32 %v40, %v42
    %v57 = vmul.f32 %v41, %v43
    %v58 = vsub.f32 %v54, %v56
    %v59 = vsub.f32 %v55, %v57
    %v60 = vlog2.pop %v52
    %v61 = vmul.f32 %v60, 0.6931472
    %v62 = vlog2.pop %v53
    %v63 = vmul.f32 %v62, 0.6931472
    %v64 = vadd.f32 %v58, %v61
    %v65 = vadd.f32 %v59, %v63
    %v66 = vrcp.pop %v52
    %v67 = vmul.f32 1.0, %v66
    %v68 = vrcp.pop %v53
    %v69 = vmul.f32 1.0, %v68
    %vm70 = vcmp.ge.f32.partialorder %v40, 0.0
    %vm71 = vcmp.ge.f32.partialorder %v41, 0.0
    %v72 = vsub.f32 1.0, %v67
    %v73 = vsub.f32 1.0, %v69
    %v74 = vsel %vm70, %v67, %v72
    %v75 = vsel %vm71, %v69, %v73
    %v76 = vmul.f32 %v74, 2.0
    %v77 = vmul.f32 %v75, 2.0
    %v78 = vsub.f32 1.0, %v76
    %v79 = vsub.f32 1.0, %v77
    %v80 = vmul.f32 %v42, %v78
    %v81 = vmul.f32 %v43, %v79
    %v82 = vadd.f32 %v74, %v80
    %v83 = vadd.f32 %v75, %v81
    %v84 = vmul.f32 %v42, -0.5
    %v85 = vmul.f32 %v43, -0.5
    %v86 = vadd.f32 %v84, 0.75
    %v87 = vadd.f32 %v85, 0.75
    %v88 = vrsqrt.pop %v82
    %v89 = vmul.f32 %v82, %v88
    %vm90 = vcmp.eq.f32.partialorder %v82, inf
    %v91 = vsel %vm90, %v82, %v89
    %vm92 = vcmp.eq.f32.partialorder %v82, 0.0
    %v93 = vand.u32 %v82, 2147483648
    %v94 = vsel %vm92, %v93, %v91
    %v95 = vrsqrt.pop %v83
    %v96 = vmul.f32 %v83, %v95
    %vm97 = vcmp.eq.f32.partialorder %v83, inf
    %v98 = vsel %vm97, %v83, %v96
    %vm99 = vcmp.eq.f32.partialorder %v83, 0.0
    %v100 = vand.u32 %v83, 2147483648
    %v101 = vsel %vm99, %v100, %v98
    %v102 = vmul.f32 %v82, %v94
    %v103 = vmul.f32 %v83, %v101
    %v104 = vmul.f32 %v86, %v102
    %v105 = vmul.f32 %v87, %v103
    %v106 = vmul.f32 %v64, %v104
    %v107 = vmul.f32 %v65, %v105
    %v108 = vadd.f32 %v106, %v107
    %109 = vst [vmem:[#allocation7] sm:$0xff] %v108
    // Predicated region
    $region18: #{tpu_custom_call.1} parent=1 // pred_check
      _
    $region19: #{tpu_custom_call.1} parent=1 // pred_check_branch
      %111 = sbr.rel (0) target = $region21
    $region20: #{tpu_custom_call.1} parent=1 // pred_region
      %s113 = ssub.s32 128, 128
      %114 = vsyncadd [#allocation4], %s113
      %s116 = sshll.u32 [#allocation7], 4
      %s117 = int_to_ptr.vmem [resolvable:$true] %s116
      %119 = dma.vmem_to_hbm [thread:$0]  %s117, 128, %s2, [#allocation4]
    $region21: #{tpu_custom_call.1} parent=1 // pred_fallthru
      _
    // Predicated region
    $region22: #{tpu_custom_call.1} parent=1 // pred_check
      _
    $region23: #{tpu_custom_call.1} parent=1 // pred_check_branch
      %121 = sbr.rel (0) target = $region25
    $region24: #{tpu_custom_call.1} parent=1 // pred_region
      %122 = dma.done [#allocation4], 128
    $region25: #{tpu_custom_call.1} parent=1 // pred_fallthru
      _
    %123 = vsyncpa [#allocation3], 1
    %124 = vsyncpa [#allocation6], 1
    %125 = vsyncpa [#allocation4], 1

</llo_original>
